<compile_context>
chip_gen: v5e
topology: v5e:2x2
jax: 0.10.0
libtpu: 0.0.40
codegen_flags: <defaults>
</compile_context>

<pallas_src>
import functools

import jax
import jax.numpy as jnp
from jax.experimental import pallas as pl
from jax.experimental.pallas import tpu as pltpu


# --------------------------------------------------------------------------- #
# Kernel body
# --------------------------------------------------------------------------- #
def _rmsnorm_kernel(x_ref, w_ref, o_ref, *, eps: float, inv_dim: float):
    # x_ref: (tile_rows, dim_p) activations; w_ref: (1, dim_p) weight.
    # Pass 1: sum of squares in f32, divided by the TRUE (unpadded) dim.
    xf = x_ref[...].astype(jnp.float32)                       # x.float()
    ss = jnp.sum(xf * xf, axis=-1, keepdims=True)             # sum(x^2)
    inv = jax.lax.rsqrt(ss * inv_dim + eps)                   # rsqrt(mean + eps)
    # Pass 2: re-read the low-precision block instead of keeping the f32 copy
    # live across the reduction (halves VMEM temporaries / ld-st traffic).
    normed = (x_ref[...].astype(jnp.float32) * inv).astype(x_ref.dtype)  # .type_as(x)
    o_ref[...] = (normed * w_ref[...]).astype(o_ref.dtype)    # * weight


# --------------------------------------------------------------------------- #
# Tile-size selection
# --------------------------------------------------------------------------- #
_TARGET_BLOCK_BYTES = 4 * 1024 * 1024    # ~4 MiB of x per block (HBM roofline, v7x-safe)
_MIN_GRID_STEPS = 8                      # >= 4 steps per TensorCore on v7x megacore


def _round_up(x: int, m: int) -> int:
    return ((x + m - 1) // m) * m


def _vmem_capacity_bytes() -> int:
    try:
        return int(pltpu.get_tpu_info().vmem_capacity_bytes)
    except Exception:
        # Generation-aware fallback instead of blindly assuming the smallest VMEM.
        try:
            kind = jax.devices()[0].device_kind.lower()
        except Exception:
            kind = ""
        if "v7" in kind:
            return 64 * 1024 * 1024        # v7x: 64 MiB per TensorCore
        if "v5" in kind or "v6" in kind:
            return 128 * 1024 * 1024       # v5e / v6e: 128 MiB
        return 64 * 1024 * 1024            # unknown: be conservative


def _pick_tile_rows(rows: int, dim_p: int, itemsize: int) -> int:
    """Largest sublane-aligned row tile targeting ~_TARGET_BLOCK_BYTES of x."""
    # Native sublane packing: f32 -> 8 rows/vreg, bf16 -> 16, int8/fp8 -> 32.
    row_align = max(8, 32 // itemsize)
    if rows <= row_align:
        return rows                        # full-extent block; always legal

    bytes_per_row = dim_p * itemsize
    tile_rows = max(row_align, _TARGET_BLOCK_BYTES // bytes_per_row)

    # Keep >= _MIN_GRID_STEPS grid steps when rows allow it so each core keeps
    # its pipeline full (and both v7x cores stay balanced).
    if rows >= _MIN_GRID_STEPS * row_align:
        tile_rows = min(tile_rows, pl.cdiv(rows, _MIN_GRID_STEPS))

    tile_rows = min(tile_rows, rows)
    return max(row_align, (tile_rows // row_align) * row_align)


# --------------------------------------------------------------------------- #
# Public wrapper
# --------------------------------------------------------------------------- #
def rmsnorm(x: jax.Array, weight: jax.Array, eps: float = 1e-6,
            tile_rows: int | None = None) -> jax.Array:
    """RMSNorm over the last axis of x using a Pallas TPU kernel."""
    orig_shape = x.shape
    dim = orig_shape[-1]
    rows = 1
    for s in orig_shape[:-1]:
        rows *= s

    x2d = x.reshape(rows, dim)
    w2d = weight.reshape(1, dim)

    # Pad the last dim to a multiple of 128 so blocks are lane-dense
    # (zero columns contribute nothing to the sum; the mean divides by `dim`).
    dim_p = _round_up(dim, 128)
    if dim_p != dim:
        x2d = jnp.pad(x2d, ((0, 0), (0, dim_p - dim)))
        w2d = jnp.pad(w2d, ((0, 0), (0, dim_p - dim)))

    itemsize = x.dtype.itemsize
    if tile_rows is None:
        tile_rows = _pick_tile_rows(rows, dim_p, itemsize)
    tile_rows = max(1, min(tile_rows, rows))

    grid = (pl.cdiv(rows, tile_rows),)

    # Output dtype follows PyTorch's promotion of `normed.type_as(x) * weight`.
    out_dtype = jnp.promote_types(x.dtype, weight.dtype)

    vmem_cap = _vmem_capacity_bytes()
    vmem_limit = int(min(vmem_cap * 3 // 4, 96 * 1024 * 1024))

    cost = pl.CostEstimate(
        flops=4 * rows * dim,
        transcendentals=rows,
        bytes_accessed=(rows * dim * itemsize
                        + rows * dim * jnp.dtype(out_dtype).itemsize
                        + dim * weight.dtype.itemsize),
    )

    kernel = functools.partial(_rmsnorm_kernel, eps=eps, inv_dim=1.0 / float(dim))

    out2d = pl.pallas_call(
        kernel,
        out_shape=jax.ShapeDtypeStruct((rows, dim_p), out_dtype),
        grid_spec=pltpu.PrefetchScalarGridSpec(
            num_scalar_prefetch=0,
            grid=grid,
            in_specs=[
                pl.BlockSpec((tile_rows, dim_p), lambda i: (i, 0)),
                pl.BlockSpec((1, dim_p), lambda i: (0, 0)),
            ],
            out_specs=pl.BlockSpec((tile_rows, dim_p), lambda i: (i, 0)),
        ),
        compiler_params=pltpu.CompilerParams(
            dimension_semantics=("parallel",),
            vmem_limit_bytes=vmem_limit,
        ),
        cost_estimate=cost,
    )(x2d, w2d)

    if dim_p != dim:
        out2d = out2d[:, :dim]
    return out2d.reshape(orig_shape[:-1] + (dim,))


# --------------------------------------------------------------------------- #
# Pure-JAX reference (mirrors the PyTorch module exactly)
# --------------------------------------------------------------------------- #
def _ref_rmsnorm(x, w, eps):
    xf = x.astype(jnp.float32)
    normed = (xf * jax.lax.rsqrt(jnp.mean(xf * xf, axis=-1, keepdims=True) + eps)
              ).astype(x.dtype)
    return normed * w


if __name__ == "__main__":
    eps = 1e-6
    key = jax.random.PRNGKey(0)
    k1, k2 = jax.random.split(key)

    # Case 1: small shape consistent with the module (batch=2, seq=8, dim=128).
    x1 = jax.random.normal(k1, (2, 8, 128), dtype=jnp.float32).astype(jnp.bfloat16)
    w1 = jnp.ones((128,), dtype=jnp.bfloat16)   # nn.Parameter(torch.ones(dim))
    out1 = jax.block_until_ready(rmsnorm(x1, w1, eps=eps))
    ref1 = _ref_rmsnorm(x1, w1, eps)
    assert out1.shape == x1.shape and out1.dtype == x1.dtype
    assert jnp.allclose(out1.astype(jnp.float32), ref1.astype(jnp.float32),
                        atol=1e-2, rtol=1e-2)

    # Case 2: ragged row count + non-128-multiple dim + non-trivial weight
    # (exercises both the masked tail block and the lane-padding path).
    x2 = jax.random.normal(k2, (3, 37, 96), dtype=jnp.float32).astype(jnp.bfloat16)
    w2 = (1.0 + 0.05 * jnp.arange(96, dtype=jnp.float32)).astype(jnp.bfloat16)
    out2 = jax.block_until_ready(rmsnorm(x2, w2, eps=eps))
    ref2 = _ref_rmsnorm(x2, w2, eps)
    assert out2.shape == x2.shape and out2.dtype == x2.dtype
    assert jnp.allclose(out2.astype(jnp.float32), ref2.astype(jnp.float32),
                        atol=2e-2, rtol=2e-2)

    print("KERNEL_OK")
</pallas_src>

<mosaic_0001>
module attributes {stable_mosaic.version = 11 : i64} {
  func.func @_rmsnorm_kernel(%arg0: i32, %arg1: memref<16x128xbf16, #tpu.memory_space<vmem>>, %arg2: memref<1x128xbf16, #tpu.memory_space<vmem>>, %arg3: memref<16x128xbf16, #tpu.memory_space<vmem>>) attributes {dimension_semantics = [#tpu.dimension_semantics<parallel>], iteration_bounds = array<i64: 1>, scalar_prefetch = 0 : i64, scratch_operands = 0 : i64, tpu.core_type = #tpu.core_type<tc>, window_params = [{transform_indices = @transform_0, window_bounds = array<i64: 16, 128>}, {pipeline_mode = #tpu.pipeline_mode<synchronous>, transform_indices = @transform_1, window_bounds = array<i64: 1, 128>}, {transform_indices = @transform_2, window_bounds = array<i64: 16, 128>}]} {
    %c0 = arith.constant 0 : index
    %c0_0 = arith.constant 0 : index
    %0 = vector.load %arg1[%c0, %c0_0] : memref<16x128xbf16, #tpu.memory_space<vmem>>, vector<16x128xbf16>
    %1 = arith.extf %0 : vector<16x128xbf16> to vector<16x128xf32>
    %2 = arith.mulf %1, %1 : vector<16x128xf32>
    %cst = arith.constant dense<0.000000e+00> : vector<16xf32>
    %3 = vector.multi_reduction <add>, %2, %cst [1] : vector<16x128xf32> to vector<16xf32>
    %4 = vector.shape_cast %3 : vector<16xf32> to vector<16x1xf32>
    %cst_1 = arith.constant 7.812500e-03 : f32
    %5 = vector.broadcast %cst_1 : f32 to vector<16x1xf32>
    %6 = arith.mulf %4, %5 : vector<16x1xf32>
    %cst_2 = arith.constant 9.99999997E-7 : f32
    %7 = vector.broadcast %cst_2 : f32 to vector<16x1xf32>
    %8 = arith.addf %6, %7 : vector<16x1xf32>
    %9 = math.rsqrt %8 : vector<16x1xf32>
    %c0_3 = arith.constant 0 : index
    %c0_4 = arith.constant 0 : index
    %10 = vector.load %arg1[%c0_3, %c0_4] : memref<16x128xbf16, #tpu.memory_space<vmem>>, vector<16x128xbf16>
    %11 = arith.extf %10 : vector<16x128xbf16> to vector<16x128xf32>
    %12 = vector.broadcast %9 : vector<16x1xf32> to vector<16x128xf32>
    %13 = arith.mulf %11, %12 : vector<16x128xf32>
    %14 = arith.truncf %13 : vector<16x128xf32> to vector<16x128xbf16>
    %c0_5 = arith.constant 0 : index
    %c0_6 = arith.constant 0 : index
    %15 = vector.load %arg2[%c0_5, %c0_6] : memref<1x128xbf16, #tpu.memory_space<vmem>>, vector<1x128xbf16>
    %16 = vector.broadcast %15 : vector<1x128xbf16> to vector<16x128xbf16>
    %17 = arith.mulf %14, %16 : vector<16x128xbf16>
    %c0_7 = arith.constant 0 : index
    %c0_8 = arith.constant 0 : index
    %18 = vector.load %arg3[%c0_7, %c0_8] : memref<16x128xbf16, #tpu.memory_space<vmem>>, vector<16x128xbf16>
    tpu.vector_store %arg3[%c0_7, %c0_8], %17 {strides = array<i32>} : memref<16x128xbf16, #tpu.memory_space<vmem>>, vector<16x128xbf16>,
    return
  }
  func.func @transform_0(%arg0: i32) -> (i32, i32) {
    %c0_i32 = arith.constant 0 : i32
    %c0_i32_0 = arith.constant 0 : i32
    return %arg0, %c0_i32 : i32, i32
  }
  func.func @transform_1(%arg0: i32) -> (i32, i32) {
    %c0_i32 = arith.constant 0 : i32
    %c0_i32_0 = arith.constant 0 : i32
    %c0_i32_1 = arith.constant 0 : i32
    return %c0_i32, %c0_i32_0 : i32, i32
  }
  func.func @transform_2(%arg0: i32) -> (i32, i32) {
    %c0_i32 = arith.constant 0 : i32
    %c0_i32_0 = arith.constant 0 : i32
    return %arg0, %c0_i32 : i32, i32
  }
}

</mosaic_0001>

<llo_original>
// kernel: tpu_custom_call.1
$region0: #{tpu_custom_call.1}
  #allocation0 [shape = 'u32[]', space=smem, size = 0x4, offset = 0x4, fixed_abs, tag = 'smem constant byte address 0x4 - core index']
  #allocation1 [shape = 'u32[72,128]{1,0:T(1,128)}', space=vmem, size = 0x9000, scoped, tag = 'internal scratch']
  %s0 = inlined_call_operand.hbm [shape: bf16[16,128], index: 0, kind: input, shape index: {}]
  %s1 = inlined_call_operand.hbm [shape: bf16[1,128], index: 1, kind: input, shape index: {}]
  %s2 = inlined_call_operand.hbm [shape: bf16[16,128], index: 2, kind: output, shape index: {}]
  %s3 = sld [smem:[#allocation0]]
  $region26: #{tpu_custom_call.1} parent=0
    _
  %s5 = ssub.s32 1, %s3
  %s6 = scalar_select 0, %s5, %s3
  $region1: #{tpu_custom_call.1} parent=0
    #allocation2 [shape = 'u8[4096]{0}', space=vmem, size = 0x1000, scoped, tag = 'input window, operand 0, single buffered']
    #allocation3 [shape = 's32[1]{0}', space=sflag, size = 0x4, scoped, tag = 'scoped memory for tpu_custom_call.1']
    #allocation4 [shape = 's32[1]{0}', space=sflag, size = 0x4, scoped, tag = 'scoped memory for tpu_custom_call.1']
    #allocation5 [shape = 'u8[512]{0}', space=vmem, size = 0x400, scoped, tag = 'input window, operand 1, single buffered']
    #allocation6 [shape = 's32[1]{0}', space=sflag, size = 0x4, scoped, tag = 'scoped memory for tpu_custom_call.1']
    #allocation7 [shape = 'u8[4096]{0}', space=vmem, size = 0x1000, scoped, tag = 'output window, operand 0, single buffered']
    %7 = vsyncpa [#allocation3], 0
    %8 = vsyncpa [#allocation6], 0
    %9 = vsyncpa [#allocation4], 0
    // Predicated region
    $region2: #{tpu_custom_call.1} parent=1 // pred_check
      _
    $region3: #{tpu_custom_call.1} parent=1 // pred_check_branch
      %11 = sbr.rel (0) target = $region5
    $region4: #{tpu_custom_call.1} parent=1 // pred_region
      %13 = vsyncadd [#allocation3], 0
      %s14 = sshll.u32 %s0, 4
      %s15 = int_to_ptr.hbm [resolvable:$true] %s14
      %s16 = sshll.u32 [#allocation2], 4
      %s17 = int_to_ptr.vmem [resolvable:$true] %s16
      %22 = dma.hbm_to_vmem [thread:$0]  %s15, 128, %s17, [#allocation3], 64, 64, 4
    $region5: #{tpu_custom_call.1} parent=1 // pred_fallthru
      _
    // Predicated region
    $region6: #{tpu_custom_call.1} parent=1 // pred_check
      _
    $region7: #{tpu_custom_call.1} parent=1 // pred_check_branch
      %24 = sbr.rel (0) target = $region9
    $region8: #{tpu_custom_call.1} parent=1 // pred_region
      %26 = vsyncadd [#allocation6], 0
      %s28 = sshll.u32 %s1, 4
      %s29 = int_to_ptr.hbm [resolvable:$true] %s28
      %s30 = sshll.u32 [#allocation5], 4
      %s31 = int_to_ptr.vmem [resolvable:$true] %s30
      %33 = dma.hbm_to_vmem [thread:$0]  %s29, 16, %s31, [#allocation6]
    $region9: #{tpu_custom_call.1} parent=1 // pred_fallthru
      _
    // Predicated region
    $region10: #{tpu_custom_call.1} parent=1 // pred_check
      _
    $region11: #{tpu_custom_call.1} parent=1 // pred_check_branch
      %35 = sbr.rel (0) target = $region13
    $region12: #{tpu_custom_call.1} parent=1 // pred_region
      %37 = dma.done [#allocation3], 128
    $region13: #{tpu_custom_call.1} parent=1 // pred_fallthru
      _
    // Predicated region
    $region14: #{tpu_custom_call.1} parent=1 // pred_check
      _
    $region15: #{tpu_custom_call.1} parent=1 // pred_check_branch
      %39 = sbr.rel (0) target = $region17
    $region16: #{tpu_custom_call.1} parent=1 // pred_region
      %41 = dma.done [#allocation6], 16
    $region17: #{tpu_custom_call.1} parent=1 // pred_fallthru
      _
    %v42 = vld [vmem:[#allocation2] sm:$0xf]
    %v43 = vld [vmem:[#allocation2 + $0x4] sm:$0xf]
    %v44 = vunpack.c.l.bf16 %v42
    %v45 = vunpack.c.l.bf16 %v43
    %v46 = vmul.f32 %v44, %v44
    %v47 = vmul.f32 %v45, %v45
    %48 = vadd.xlane.f32.xlu0 %v46
    %v49 = vpop.xlane.xlu0 %48
    %50 = vadd.xlane.f32.xlu0 %v47
    %v51 = vpop.xlane.xlu0 %50
    %v52 = vmul.f32 %v49, 0.0078125
    %v53 = vmul.f32 %v51, 0.0078125
    %v54 = vadd.f32 %v52, 1e-06
    %v55 = vadd.f32 %v53, 1e-06
    %v56 = vrsqrt.pop %v54
    %v57 = vmul.f32 %v56, %v54
    %v58 = vmul.f32 %v57, %v56
    %v59 = vmul.f32 0.5, %v58
    %v60 = vsub.f32 1.5, %v59
    %v61 = vmul.f32 %v56, %v60
    %vm62 = vweird.f32 %v54
    %vm63 = vweird.f32 %v56
    %vm64 = vmor %vm62, %vm63
    %v65 = vsel %vm64, %v56, %v61
    %v66 = vrsqrt.pop %v55
    %v67 = vmul.f32 %v66, %v55
    %v68 = vmul.f32 %v67, %v66
    %v69 = vmul.f32 0.5, %v68
    %v70 = vsub.f32 1.5, %v69
    %v71 = vmul.f32 %v66, %v70
    %vm72 = vweird.f32 %v55
    %vm73 = vweird.f32 %v66
    %vm74 = vmor %vm72, %vm73
    %v75 = vsel %vm74, %v66, %v71
    %v76 = vmul.f32 %v44, %v65
    %v77 = vmul.f32 %v45, %v75
    %v78 = vpack.c.bf16 %v76, %v76
    %v79 = vpack.c.bf16 %v77, %v77
    %v80 = vld [vmem:[#allocation5] sm:$0x1]
    %v82 = vpack.i.b16 %v80, %v80
    %v84 = vperm.slane %v82, 0
    %v85 = vunpack.c.l.bf16 %v78
    %v86 = vunpack.c.l.bf16 %v79
    %v87 = vunpack.c.l.bf16 %v84
    %v88 = vmul.f32 %v85, %v87
    %v89 = vmul.f32 %v86, %v87
    %v90 = vpack.c.bf16 %v88, %v88
    %v91 = vpack.c.bf16 %v89, %v89
    %92 = vst [vmem:[#allocation7] sm:$0xf] %v90
    %93 = vst [vmem:[#allocation7 + $0x4] sm:$0xf] %v91
    // Predicated region
    $region18: #{tpu_custom_call.1} parent=1 // pred_check
      _
    $region19: #{tpu_custom_call.1} parent=1 // pred_check_branch
      %95 = sbr.rel (0) target = $region21
    $region20: #{tpu_custom_call.1} parent=1 // pred_region
      %97 = vsyncadd [#allocation4], 0
      %s98 = sshll.u32 [#allocation7], 4
      %s99 = int_to_ptr.vmem [resolvable:$true] %s98
      %s100 = sshll.u32 %s2, 4
      %s101 = int_to_ptr.hbm [resolvable:$true] %s100
      %106 = dma.vmem_to_hbm [thread:$0]  %s99, 128, %s101, [#allocation4], 64, 64, 4
    $region21: #{tpu_custom_call.1} parent=1 // pred_fallthru
      _
    // Predicated region
    $region22: #{tpu_custom_call.1} parent=1 // pred_check
      _
    $region23: #{tpu_custom_call.1} parent=1 // pred_check_branch
      %108 = sbr.rel (0) target = $region25
    $region24: #{tpu_custom_call.1} parent=1 // pred_region
      %110 = dma.done [#allocation4], 128
    $region25: #{tpu_custom_call.1} parent=1 // pred_fallthru
      _
    %111 = vsyncpa [#allocation3], 1
    %112 = vsyncpa [#allocation6], 1
    %113 = vsyncpa [#allocation4], 1

</llo_original>
